<compile_context>
chip_gen: v7x
topology: tpu7x:2x2x1
jax: 0.10.0
libtpu: 0.0.40
codegen_flags: <defaults>
</compile_context>

<pallas_src>
from functools import partial

import jax
import jax.numpy as jnp
from jax.experimental import pallas as pl
from jax.experimental.pallas import tpu as pltpu


def _round_up(x, m):
    return (x + m - 1) // m * m


def _round_down(x, m):
    return (x // m) * m


# VMEM sizing: budget batch tiles against ~24 MiB so one tile choice fits v7x
# (64 MiB physical) as well as v6e/v5e, then set the scoped limit explicitly.
_VMEM_TILE_BUDGET = 24 * 1024 * 1024
_VMEM_LIMIT_BYTES = 40 * 1024 * 1024
_MAX_TILE_N = 32768   # amortizes the ~0.35 us per-grid-step overhead


def rawnet_kernel(xT_ref, w1_ref, w2_ref, bw_ref, b3_ref, out_ref, *,
                  tanh_dtype, matmul_dtype):
    """One lane-dense batch tile: columns are samples.

    xT_ref: (2, TN)   w1_ref: (H, 2)   w2_ref: (H, H)
    bw_ref: (H, 3) = [b1 | b2 | w3]    b3_ref: (1, 1) scalar in SMEM
    out_ref: (1, TN)
    """
    xT = xT_ref[...]                       # (2, TN) f32, batch on lanes
    w1 = w1_ref[...]                       # (H, 2)
    b1 = bw_ref[:, 0:1]                    # (H, 1)
    b2 = bw_ref[:, 1:2]                    # (H, 1)
    w3 = bw_ref[:, 2:3]                    # (H, 1)

    # layer1 + tanh: contraction dim K=2 -> two VPU broadcast FMAs.
    pre1 = w1[:, 0:1] * xT[0:1, :] + w1[:, 1:2] * xT[1:2, :] + b1   # (H, TN)
    h1 = jnp.tanh(pre1.astype(tanh_dtype)).astype(matmul_dtype)

    # layer2 + tanh: (H, H) @ (H, TN) on the MXU, f32 accumulation.
    pre2 = jnp.dot(w2_ref[...].astype(matmul_dtype), h1,
                   preferred_element_type=jnp.float32) + b2          # (H, TN)
    h2 = jnp.tanh(pre2.astype(tanh_dtype)).astype(jnp.float32)

    # layer3 + sigmoid: output width 1 -> VPU multiply + sublane (XLU) reduce,
    # keeping the result lane-dense as (1, TN).  sigmoid(x) = 0.5*tanh(x/2)+0.5
    # so the whole layer costs exactly one EUP op per sample.
    o = jnp.sum(h2 * w3, axis=0, keepdims=True) + b3_ref[0, 0]       # (1, TN)
    out_ref[...] = 0.5 * jnp.tanh(0.5 * o) + 0.5


def _pick_tile_n(n, h, tile_n):
    """Largest lane-dense batch tile under the VMEM budget; keep >= 2 grid
    steps when there is enough work so both v7x TensorCores get a share."""
    # Resident weights (lane-padded, worst case double-buffered).
    weight_bytes = 2 * 4 * (h * h + 2 * h * 128)
    col_budget = max(2 * 1024 * 1024, _VMEM_TILE_BUDGET - weight_bytes)
    # Per-column VMEM: ~4 live (H,.) f32 temporaries (pre/post-tanh for both
    # hidden layers) + double-buffered (2,.) input + double-buffered (1,.) out.
    bytes_per_col = 4 * (4 * h + 6)
    cap = max(128, _round_down(col_budget // bytes_per_col, 128))

    if tile_n is None:
        tile_n = _MAX_TILE_N
    tile_n = max(128, min(_round_up(tile_n, 128), cap, _MAX_TILE_N))

    n_lanes = _round_up(n, 128)
    tile_n = min(tile_n, n_lanes)
    if tile_n == n_lanes and n_lanes >= 256:
        # A single-block grid would leave one v7x TensorCore idle.
        tile_n = _round_up(n_lanes // 2, 128)
    return tile_n


def rawnet_forward(x, params, *, tile_n=None, use_bf16_tanh=False,
                   use_bf16_matmul=False):
    """x: (N, 2).  params: w1 (H,2), b1 (H,1), w2 (H,H), b2 (H,1), w3 (H,1),
    b3 (1,1).  Returns (N, 1) float32.

    use_bf16_tanh / use_bf16_matmul: EUP / MXU relief on v6e/v7x (bf16 paths);
    leave False on v5e and when comparing tightly against the f32 reference.
    """
    n = x.shape[0]
    h = params["w1"].shape[0]
    tile_n = _pick_tile_n(n, h, tile_n)
    num_tiles = pl.cdiv(n, tile_n)

    # Batch on lanes: feed x transposed and UNPADDED; ragged tail handled by
    # Pallas (padded input block, masked output stores), then sliced off.
    xT = x.astype(jnp.float32).T                              # (2, N)
    # Fold the three (H,1) vectors into one resident (H,3) operand.
    bw = jnp.concatenate(
        [params["b1"], params["b2"], params["w3"]], axis=1)   # (H, 3)

    kernel = partial(
        rawnet_kernel,
        tanh_dtype=jnp.bfloat16 if use_bf16_tanh else jnp.float32,
        matmul_dtype=jnp.bfloat16 if use_bf16_matmul else jnp.float32)

    def call(single_buffer_weights):
        wkw = ({"pipeline_mode": pl.Buffered(1)}
               if single_buffer_weights and hasattr(pl, "Buffered") else {})
        const = lambda i: (0, 0)
        return pl.pallas_call(
            kernel,
            out_shape=jax.ShapeDtypeStruct((1, n), jnp.float32),
            grid=(num_tiles,),
            in_specs=[
                pl.BlockSpec((2, tile_n), lambda i: (0, i)),        # batch tiles
                pl.BlockSpec((h, 2), const, **wkw),                 # w1 resident
                pl.BlockSpec((h, h), const, **wkw),                 # w2 resident
                pl.BlockSpec((h, 3), const, **wkw),                 # [b1|b2|w3]
                pl.BlockSpec(memory_space=pltpu.MemorySpace.SMEM),  # b3 scalar
            ],
            out_specs=pl.BlockSpec((1, tile_n), lambda i: (0, i)),  # lane-dense
            compiler_params=pltpu.CompilerParams(
                dimension_semantics=("parallel",),
                vmem_limit_bytes=_VMEM_LIMIT_BYTES),
        )(xT, params["w1"], params["w2"], bw, params["b3"])

    try:
        out = call(True)       # single-buffered resident weights
    except Exception:          # older jaxlib without Buffered(1)/pipeline_mode
        out = call(False)

    return out[0, :n].reshape(n, 1)


def init_params(key, num_hid):
    """Deterministic init mimicking PyTorch nn.Linear default
    (U[-k, k], k = 1/sqrt(fan_in)).  Weights kept in PyTorch (out, in) order;
    biases as column vectors (out, 1) so they broadcast over lanes (batch)."""
    ks = jax.random.split(key, 6)

    def linear(kw, kb, fan_in, fan_out):
        bound = 1.0 / jnp.sqrt(jnp.float32(fan_in))
        w = jax.random.uniform(kw, (fan_out, fan_in), jnp.float32,
                               minval=-bound, maxval=bound)
        b = jax.random.uniform(kb, (fan_out, 1), jnp.float32,
                               minval=-bound, maxval=bound)
        return w, b

    w1, b1 = linear(ks[0], ks[1], 2, num_hid)            # (H,2), (H,1)
    w2, b2 = linear(ks[2], ks[3], num_hid, num_hid)      # (H,H), (H,1)
    w3t, b3 = linear(ks[4], ks[5], num_hid, 1)           # (1,H), (1,1)
    return {"w1": w1, "b1": b1, "w2": w2, "b2": b2,
            "w3": w3t.T,                                  # stored (H,1)
            "b3": b3}                                     # (1,1)


def rawnet_reference(x, p):
    """Pure-JAX reference of the PyTorch forward, for correctness checks."""
    h1 = jnp.tanh(x @ p["w1"].T + p["b1"].T)
    h2 = jnp.tanh(h1 @ p["w2"].T + p["b2"].T)
    return jax.nn.sigmoid(h2 @ p["w3"] + p["b3"])


if __name__ == "__main__":
    key = jax.random.PRNGKey(0)
    k_x, k_p, k_x2 = jax.random.split(key, 3)

    batch, num_hid = 8, 32
    x = jax.random.normal(k_x, (batch, 2), dtype=jnp.float32)
    params = init_params(k_p, num_hid)

    out = jax.block_until_ready(rawnet_forward(x, params))
    ref = rawnet_reference(x, params)
    assert out.shape == (batch, 1)
    assert jnp.allclose(out, ref, atol=1e-5, rtol=1e-5), "mismatch vs reference"

    # Also exercise the multi-tile / ragged-tail path (grid >= 2, masked tail).
    x2 = jax.random.normal(k_x2, (300, 2), dtype=jnp.float32)
    out2 = jax.block_until_ready(rawnet_forward(x2, params))
    ref2 = rawnet_reference(x2, params)
    assert out2.shape == (300, 1)
    assert jnp.allclose(out2, ref2, atol=1e-5, rtol=1e-5), "mismatch (tiled)"

    print("KERNEL_OK")
</pallas_src>

<mosaic_0001>
module attributes {stable_mosaic.version = 11 : i64} {
  func.func @rawnet_kernel(%arg0: i32, %arg1: memref<2x128xf32, #tpu.memory_space<vmem>>, %arg2: memref<32x2xf32, #tpu.memory_space<vmem>>, %arg3: memref<32x32xf32, #tpu.memory_space<vmem>>, %arg4: memref<32x3xf32, #tpu.memory_space<vmem>>, %arg5: memref<1x1xf32, #tpu.memory_space<smem>>, %arg6: memref<1x128xf32, #tpu.memory_space<vmem>>) attributes {dimension_semantics = [#tpu.dimension_semantics<parallel>], iteration_bounds = array<i64: 1>, scalar_prefetch = 0 : i64, scratch_operands = 0 : i64, tpu.core_type = #tpu.core_type<tc>, window_params = [{transform_indices = @transform_0, window_bounds = array<i64: 2, 128>}, {pipeline_mode = #tpu.pipeline_mode<synchronous>, transform_indices = @transform_1, window_bounds = array<i64: 32, 2>}, {pipeline_mode = #tpu.pipeline_mode<synchronous>, transform_indices = @transform_2, window_bounds = array<i64: 32, 32>}, {pipeline_mode = #tpu.pipeline_mode<synchronous>, transform_indices = @transform_3, window_bounds = array<i64: 32, 3>}, {transform_indices = @transform_4, window_bounds = array<i64: 1, 1>}, {transform_indices = @transform_5, window_bounds = array<i64: 1, 128>}]} {
    %c0 = arith.constant 0 : index
    %c0_0 = arith.constant 0 : index
    %0 = vector.load %arg1[%c0, %c0_0] : memref<2x128xf32, #tpu.memory_space<vmem>>, vector<2x128xf32>
    %c0_1 = arith.constant 0 : index
    %c0_2 = arith.constant 0 : index
    %1 = vector.load %arg2[%c0_1, %c0_2] : memref<32x2xf32, #tpu.memory_space<vmem>>, vector<32x2xf32>
    %c0_3 = arith.constant 0 : index
    %c0_4 = arith.constant 0 : index
    %2 = vector.load %arg4[%c0_3, %c0_4] : memref<32x3xf32, #tpu.memory_space<vmem>>, vector<32x1xf32>
    %c0_5 = arith.constant 0 : index
    %c1 = arith.constant 1 : index
    %3 = vector.load %arg4[%c0_5, %c1] : memref<32x3xf32, #tpu.memory_space<vmem>>, vector<32x1xf32>
    %c0_6 = arith.constant 0 : index
    %c2 = arith.constant 2 : index
    %4 = vector.load %arg4[%c0_6, %c2] : memref<32x3xf32, #tpu.memory_space<vmem>>, vector<32x1xf32>
    %5 = vector.extract_strided_slice %1 {offsets = [0, 0], sizes = [32, 1], strides = [1, 1]} : vector<32x2xf32> to vector<32x1xf32>
    %6 = vector.extract_strided_slice %0 {offsets = [0, 0], sizes = [1, 128], strides = [1, 1]} : vector<2x128xf32> to vector<1x128xf32>
    %7 = vector.broadcast %5 : vector<32x1xf32> to vector<32x128xf32>
    %8 = vector.broadcast %6 : vector<1x128xf32> to vector<32x128xf32>
    %9 = arith.mulf %7, %8 : vector<32x128xf32>
    %10 = vector.extract_strided_slice %1 {offsets = [0, 1], sizes = [32, 1], strides = [1, 1]} : vector<32x2xf32> to vector<32x1xf32>
    %11 = vector.extract_strided_slice %0 {offsets = [1, 0], sizes = [1, 128], strides = [1, 1]} : vector<2x128xf32> to vector<1x128xf32>
    %12 = vector.broadcast %10 : vector<32x1xf32> to vector<32x128xf32>
    %13 = vector.broadcast %11 : vector<1x128xf32> to vector<32x128xf32>
    %14 = arith.mulf %12, %13 : vector<32x128xf32>
    %15 = arith.addf %9, %14 : vector<32x128xf32>
    %16 = vector.broadcast %2 : vector<32x1xf32> to vector<32x128xf32>
    %17 = arith.addf %15, %16 : vector<32x128xf32>
    %18 = math.tanh %17 : vector<32x128xf32>
    %c0_7 = arith.constant 0 : index
    %c0_8 = arith.constant 0 : index
    %19 = vector.load %arg3[%c0_7, %c0_8] : memref<32x32xf32, #tpu.memory_space<vmem>>, vector<32x32xf32>
    %cst = arith.constant dense<0.000000e+00> : vector<32x128xf32>
    %20 = tpu.matmul %19, %18, %cst {dimension_numbers = #tpu.dot_dimension_numbers<[1], [0], [0], [1], [0, 0, 1, 1], [], []>} : vector<32x32xf32>, vector<32x128xf32>, vector<32x128xf32> -> vector<32x128xf32>
    %21 = vector.broadcast %3 : vector<32x1xf32> to vector<32x128xf32>
    %22 = arith.addf %20, %21 : vector<32x128xf32>
    %23 = math.tanh %22 : vector<32x128xf32>
    %24 = vector.broadcast %4 : vector<32x1xf32> to vector<32x128xf32>
    %25 = arith.mulf %23, %24 : vector<32x128xf32>
    %cst_9 = arith.constant dense<0.000000e+00> : vector<128xf32>
    %26 = vector.multi_reduction <add>, %25, %cst_9 [0] : vector<32x128xf32> to vector<128xf32>
    %27 = vector.shape_cast %26 : vector<128xf32> to vector<1x128xf32>
    %c0_10 = arith.constant 0 : index
    %c0_11 = arith.constant 0 : index
    %28 = memref.load %arg5[%c0_10, %c0_11] : memref<1x1xf32, #tpu.memory_space<smem>>
    %29 = vector.broadcast %28 : f32 to vector<1x128xf32>
    %30 = arith.addf %27, %29 : vector<1x128xf32>
    %cst_12 = arith.constant 5.000000e-01 : f32
    %31 = vector.broadcast %cst_12 : f32 to vector<1x128xf32>
    %32 = arith.mulf %31, %30 : vector<1x128xf32>
    %33 = math.tanh %32 : vector<1x128xf32>
    %cst_13 = arith.constant 5.000000e-01 : f32
    %34 = vector.broadcast %cst_13 : f32 to vector<1x128xf32>
    %35 = arith.mulf %34, %33 : vector<1x128xf32>
    %cst_14 = arith.constant 5.000000e-01 : f32
    %36 = vector.broadcast %cst_14 : f32 to vector<1x128xf32>
    %37 = arith.addf %35, %36 : vector<1x128xf32>
    %c0_15 = arith.constant 0 : index
    %c0_16 = arith.constant 0 : index
    %38 = vector.load %arg6[%c0_15, %c0_16] : memref<1x128xf32, #tpu.memory_space<vmem>>, vector<1x128xf32>
    tpu.vector_store %arg6[%c0_15, %c0_16], %37 {strides = array<i32>} : memref<1x128xf32, #tpu.memory_space<vmem>>, vector<1x128xf32>,
    return
  }
  func.func @transform_0(%arg0: i32) -> (i32, i32) {
    %c0_i32 = arith.constant 0 : i32
    %c0_i32_0 = arith.constant 0 : i32
    return %c0_i32, %arg0 : i32, i32
  }
  func.func @transform_1(%arg0: i32) -> (i32, i32) {
    %c0_i32 = arith.constant 0 : i32
    %c0_i32_0 = arith.constant 0 : i32
    %c0_i32_1 = arith.constant 0 : i32
    return %c0_i32, %c0_i32_0 : i32, i32
  }
  func.func @transform_2(%arg0: i32) -> (i32, i32) {
    %c0_i32 = arith.constant 0 : i32
    %c0_i32_0 = arith.constant 0 : i32
    %c0_i32_1 = arith.constant 0 : i32
    return %c0_i32, %c0_i32_0 : i32, i32
  }
  func.func @transform_3(%arg0: i32) -> (i32, i32) {
    %c0_i32 = arith.constant 0 : i32
    %c0_i32_0 = arith.constant 0 : i32
    %c0_i32_1 = arith.constant 0 : i32
    return %c0_i32, %c0_i32_0 : i32, i32
  }
  func.func @transform_4(%arg0: i32) -> (i32, i32) {
    %c0_i32 = arith.constant 0 : i32
    %c0_i32_0 = arith.constant 0 : i32
    %c0_i32_1 = arith.constant 0 : i32
    return %c0_i32, %c0_i32_0 : i32, i32
  }
  func.func @transform_5(%arg0: i32) -> (i32, i32) {
    %c0_i32 = arith.constant 0 : i32
    %c0_i32_0 = arith.constant 0 : i32
    return %c0_i32, %arg0 : i32, i32
  }
}

module attributes {stable_mosaic.version = 11 : i64} {
  func.func @rawnet_kernel(%arg0: i32, %arg1: memref<2x128xf32, #tpu.memory_space<vmem>>, %arg2: memref<32x2xf32, #tpu.memory_space<vmem>>, %arg3: memref<32x32xf32, #tpu.memory_space<vmem>>, %arg4: memref<32x3xf32, #tpu.memory_space<vmem>>, %arg5: memref<1x1xf32, #tpu.memory_space<smem>>, %arg6: memref<1x128xf32, #tpu.memory_space<vmem>>) attributes {dimension_semantics = [#tpu.dimension_semantics<parallel>], iteration_bounds = array<i64: 1>, scalar_prefetch = 0 : i64, scratch_operands = 0 : i64, tpu.core_type = #tpu.core_type<tc>, window_params = [{transform_indices = @transform_0, window_bounds = array<i64: 2, 128>}, {pipeline_mode = #tpu.pipeline_mode<synchronous>, transform_indices = @transform_1, window_bounds = array<i64: 32, 2>}, {pipeline_mode = #tpu.pipeline_mode<synchronous>, transform_indices = @transform_2, window_bounds = array<i64: 32, 32>}, {pipeline_mode = #tpu.pipeline_mode<synchronous>, transform_indices = @transform_3, window_bounds = array<i64: 32, 3>}, {transform_indices = @transform_4, window_bounds = array<i64: 1, 1>}, {transform_indices = @transform_5, window_bounds = array<i64: 1, 128>}]} {
    %c0 = arith.constant 0 : index
    %c0_0 = arith.constant 0 : index
    %0 = vector.load %arg1[%c0, %c0_0] : memref<2x128xf32, #tpu.memory_space<vmem>>, vector<2x128xf32>
    %c0_1 = arith.constant 0 : index
    %c0_2 = arith.constant 0 : index
    %1 = vector.load %arg2[%c0_1, %c0_2] : memref<32x2xf32, #tpu.memory_space<vmem>>, vector<32x2xf32>
    %c0_3 = arith.constant 0 : index
    %c0_4 = arith.constant 0 : index
    %2 = vector.load %arg4[%c0_3, %c0_4] : memref<32x3xf32, #tpu.memory_space<vmem>>, vector<32x1xf32>
    %c0_5 = arith.constant 0 : index
    %c1 = arith.constant 1 : index
    %3 = vector.load %arg4[%c0_5, %c1] : memref<32x3xf32, #tpu.memory_space<vmem>>, vector<32x1xf32>
    %c0_6 = arith.constant 0 : index
    %c2 = arith.constant 2 : index
    %4 = vector.load %arg4[%c0_6, %c2] : memref<32x3xf32, #tpu.memory_space<vmem>>, vector<32x1xf32>
    %5 = vector.extract_strided_slice %1 {offsets = [0, 0], sizes = [32, 1], strides = [1, 1]} : vector<32x2xf32> to vector<32x1xf32>
    %6 = vector.extract_strided_slice %0 {offsets = [0, 0], sizes = [1, 128], strides = [1, 1]} : vector<2x128xf32> to vector<1x128xf32>
    %7 = vector.broadcast %5 : vector<32x1xf32> to vector<32x128xf32>
    %8 = vector.broadcast %6 : vector<1x128xf32> to vector<32x128xf32>
    %9 = arith.mulf %7, %8 : vector<32x128xf32>
    %10 = vector.extract_strided_slice %1 {offsets = [0, 1], sizes = [32, 1], strides = [1, 1]} : vector<32x2xf32> to vector<32x1xf32>
    %11 = vector.extract_strided_slice %0 {offsets = [1, 0], sizes = [1, 128], strides = [1, 1]} : vector<2x128xf32> to vector<1x128xf32>
    %12 = vector.broadcast %10 : vector<32x1xf32> to vector<32x128xf32>
    %13 = vector.broadcast %11 : vector<1x128xf32> to vector<32x128xf32>
    %14 = arith.mulf %12, %13 : vector<32x128xf32>
    %15 = arith.addf %9, %14 : vector<32x128xf32>
    %16 = vector.broadcast %2 : vector<32x1xf32> to vector<32x128xf32>
    %17 = arith.addf %15, %16 : vector<32x128xf32>
    %18 = math.tanh %17 : vector<32x128xf32>
    %c0_7 = arith.constant 0 : index
    %c0_8 = arith.constant 0 : index
    %19 = vector.load %arg3[%c0_7, %c0_8] : memref<32x32xf32, #tpu.memory_space<vmem>>, vector<32x32xf32>
    %cst = arith.constant dense<0.000000e+00> : vector<32x128xf32>
    %20 = tpu.matmul %19, %18, %cst {dimension_numbers = #tpu.dot_dimension_numbers<[1], [0], [0], [1], [0, 0, 1, 1], [], []>} : vector<32x32xf32>, vector<32x128xf32>, vector<32x128xf32> -> vector<32x128xf32>
    %21 = vector.broadcast %3 : vector<32x1xf32> to vector<32x128xf32>
    %22 = arith.addf %20, %21 : vector<32x128xf32>
    %23 = math.tanh %22 : vector<32x128xf32>
    %24 = vector.broadcast %4 : vector<32x1xf32> to vector<32x128xf32>
    %25 = arith.mulf %23, %24 : vector<32x128xf32>
    %cst_9 = arith.constant dense<0.000000e+00> : vector<128xf32>
    %26 = vector.multi_reduction <add>, %25, %cst_9 [0] : vector<32x128xf32> to vector<128xf32>
    %27 = vector.shape_cast %26 : vector<128xf32> to vector<1x128xf32>
    %c0_10 = arith.constant 0 : index
    %c0_11 = arith.constant 0 : index
    %28 = memref.load %arg5[%c0_10, %c0_11] : memref<1x1xf32, #tpu.memory_space<smem>>
    %29 = vector.broadcast %28 : f32 to vector<1x128xf32>
    %30 = arith.addf %27, %29 : vector<1x128xf32>
    %cst_12 = arith.constant 5.000000e-01 : f32
    %31 = vector.broadcast %cst_12 : f32 to vector<1x128xf32>
    %32 = arith.mulf %31, %30 : vector<1x128xf32>
    %33 = math.tanh %32 : vector<1x128xf32>
    %cst_13 = arith.constant 5.000000e-01 : f32
    %34 = vector.broadcast %cst_13 : f32 to vector<1x128xf32>
    %35 = arith.mulf %34, %33 : vector<1x128xf32>
    %cst_14 = arith.constant 5.000000e-01 : f32
    %36 = vector.broadcast %cst_14 : f32 to vector<1x128xf32>
    %37 = arith.addf %35, %36 : vector<1x128xf32>
    %c0_15 = arith.constant 0 : index
    %c0_16 = arith.constant 0 : index
    %38 = vector.load %arg6[%c0_15, %c0_16] : memref<1x128xf32, #tpu.memory_space<vmem>>, vector<1x128xf32>
    tpu.vector_store %arg6[%c0_15, %c0_16], %37 {strides = array<i32>} : memref<1x128xf32, #tpu.memory_space<vmem>>, vector<1x128xf32>,
    return
  }
  func.func @transform_0(%arg0: i32) -> (i32, i32) {
    %c0_i32 = arith.constant 0 : i32
    %c0_i32_0 = arith.constant 0 : i32
    return %c0_i32, %arg0 : i32, i32
  }
  func.func @transform_1(%arg0: i32) -> (i32, i32) {
    %c0_i32 = arith.constant 0 : i32
    %c0_i32_0 = arith.constant 0 : i32
    %c0_i32_1 = arith.constant 0 : i32
    return %c0_i32, %c0_i32_0 : i32, i32
  }
  func.func @transform_2(%arg0: i32) -> (i32, i32) {
    %c0_i32 = arith.constant 0 : i32
    %c0_i32_0 = arith.constant 0 : i32
    %c0_i32_1 = arith.constant 0 : i32
    return %c0_i32, %c0_i32_0 : i32, i32
  }
  func.func @transform_3(%arg0: i32) -> (i32, i32) {
    %c0_i32 = arith.constant 0 : i32
    %c0_i32_0 = arith.constant 0 : i32
    %c0_i32_1 = arith.constant 0 : i32
    return %c0_i32, %c0_i32_0 : i32, i32
  }
  func.func @transform_4(%arg0: i32) -> (i32, i32) {
    %c0_i32 = arith.constant 0 : i32
    %c0_i32_0 = arith.constant 0 : i32
    %c0_i32_1 = arith.constant 0 : i32
    return %c0_i32, %c0_i32_0 : i32, i32
  }
  func.func @transform_5(%arg0: i32) -> (i32, i32) {
    %c0_i32 = arith.constant 0 : i32
    %c0_i32_0 = arith.constant 0 : i32
    return %c0_i32, %arg0 : i32, i32
  }
}

</mosaic_0001>

<llo_original>
// kernel: tpu_custom_call.1
$region0: #{tpu_custom_call.1}
  #allocation0 [shape = 'u32[]', space=smem, size = 0x4, offset = 0x4, fixed_abs, tag = 'smem constant byte address 0x4 - core index']
  #allocation1 [shape = 'u32[144,128]{1,0:T(1,128)}', space=vmem, size = 0x12000, scoped, tag = 'internal scratch']
  #allocation2 [shape = 'f32[1,1]{1,0:T(1,128)S(6)}', space=smem, size = 0x200, scoped, tag = 'scoped memory for tpu_custom_call.1']
  %s0 = inlined_call_operand.vmem [shape: f32[2,8], index: 0, kind: input, shape index: {}]
  %s1 = inlined_call_operand.vmem [shape: f32[32,2], index: 1, kind: input, shape index: {}]
  %s2 = inlined_call_operand.vmem [shape: f32[32,32], index: 2, kind: input, shape index: {}]
  %s3 = inlined_call_operand.vmem [shape: f32[32,3], index: 3, kind: input, shape index: {}]
  %s4 = inlined_call_operand.<no memory space> [shape: f32[1,1], index: 4, kind: input, shape index: {}]
  %s5 = inlined_call_operand.hbm [shape: f32[1,8], index: 5, kind: output, shape index: {}]
  %s6 = sld [smem:[#allocation0]]
  $region30: #{tpu_custom_call.1} parent=0
    _
  %s8 = ssub.s32 1, %s6
  %s9 = scalar_select 0, %s8, %s6
  %10 = sst [smem:[#allocation2]] %s4
  $region1: #{tpu_custom_call.1} parent=0
    #allocation3 [shape = 'u8[512]{0}', space=vmem, size = 0x400, scoped, tag = 'output window, operand 0, single buffered']
    #allocation4 [shape = 's32[1]{0}', space=sflag, size = 0x4, scoped, tag = 'scoped memory for tpu_custom_call.1']
    %11 = vsyncpa [#allocation4], 0
    // Predicated region
    $region2: #{tpu_custom_call.1} parent=1 // pred_check
      _
    $region3: #{tpu_custom_call.1} parent=1 // pred_check_branch
      %13 = sbr.rel (0) target = $region5
    $region4: #{tpu_custom_call.1} parent=1 // pred_region
      _
    $region5: #{tpu_custom_call.1} parent=1 // pred_fallthru
      _
    // Predicated region
    $region6: #{tpu_custom_call.1} parent=1 // pred_check
      _
    $region7: #{tpu_custom_call.1} parent=1 // pred_check_branch
      %15 = sbr.rel (0) target = $region9
    $region8: #{tpu_custom_call.1} parent=1 // pred_region
      _
    $region9: #{tpu_custom_call.1} parent=1 // pred_fallthru
      _
    // Predicated region
    $region10: #{tpu_custom_call.1} parent=1 // pred_check
      _
    $region11: #{tpu_custom_call.1} parent=1 // pred_check_branch
      %17 = sbr.rel (0) target = $region13
    $region12: #{tpu_custom_call.1} parent=1 // pred_region
      _
    $region13: #{tpu_custom_call.1} parent=1 // pred_fallthru
      _
    // Predicated region
    $region14: #{tpu_custom_call.1} parent=1 // pred_check
      _
    $region15: #{tpu_custom_call.1} parent=1 // pred_check_branch
      %19 = sbr.rel (0) target = $region17
    $region16: #{tpu_custom_call.1} parent=1 // pred_region
      _
    $region17: #{tpu_custom_call.1} parent=1 // pred_fallthru
      _
    // Predicated region
    $region18: #{tpu_custom_call.1} parent=1 // pred_check
      _
    $region19: #{tpu_custom_call.1} parent=1 // pred_check_branch
      %21 = sbr.rel (0) target = $region21
    $region20: #{tpu_custom_call.1} parent=1 // pred_region
      _
    $region21: #{tpu_custom_call.1} parent=1 // pred_fallthru
      _
    %v22 = vld [vmem:[%s0] sm:$0x3]
    %v23 = vld [vmem:[%s1] sm:$0xff]
    %v24 = vld [vmem:[%s1 + $0x8] sm:$0xff]
    %v25 = vld [vmem:[%s1 + $0x10] sm:$0xff]
    %v26 = vld [vmem:[%s1 + $0x18] sm:$0xff]
    %v27 = vld [vmem:[%s3] sm:$0xff]
    %v28 = vld [vmem:[%s3 + $0x8] sm:$0xff]
    %v29 = vld [vmem:[%s3 + $0x10] sm:$0xff]
    %v30 = vld [vmem:[%s3 + $0x18] sm:$0xff]
    %32 = vset.pattern.permute.xlu0 0
    %33 = vperm.xlu0 %32, %v23
    %v34 = vpop.permute.xlu0 %33
    %37 = vset.pattern.permute.xlu0 0
    %38 = vperm.xlu0 %37, %v24
    %v39 = vpop.permute.xlu0 %38
    %42 = vset.pattern.permute.xlu0 0
    %43 = vperm.xlu0 %42, %v25
    %v44 = vpop.permute.xlu0 %43
    %47 = vset.pattern.permute.xlu0 0
    %48 = vperm.xlu0 %47, %v26
    %v49 = vpop.permute.xlu0 %48
    %v51 = vlaneseq
    %v52 = vshrl.u32 %v51, 7
    %v53 = vsub.s32 0, %v52
    %v54 = vrot.slane %v22, %v53
    %v55 = vmul.f32 %v34, %v54
    %v56 = vmul.f32 %v39, %v54
    %v57 = vmul.f32 %v44, %v54
    %v58 = vmul.f32 %v49, %v54
    %59 = vset.pattern.permute.xlu0 1
    %60 = vperm.xlu0 %59, %v23
    %v61 = vpop.permute.xlu0 %60
    %63 = vset.pattern.permute.xlu0 1
    %64 = vperm.xlu0 %63, %v24
    %v65 = vpop.permute.xlu0 %64
    %67 = vset.pattern.permute.xlu0 1
    %68 = vperm.xlu0 %67, %v25
    %v69 = vpop.permute.xlu0 %68
    %71 = vset.pattern.permute.xlu0 1
    %72 = vperm.xlu0 %71, %v26
    %v73 = vpop.permute.xlu0 %72
    %v75 = vlaneseq
    %v76 = vshrl.u32 %v75, 7
    %v77 = vsub.s32 1, %v76
    %v78 = vrot.slane %v22, %v77
    %v79 = vmul.f32 %v61, %v78
    %v80 = vmul.f32 %v65, %v78
    %v81 = vmul.f32 %v69, %v78
    %v82 = vmul.f32 %v73, %v78
    %v83 = vadd.f32 %v55, %v79
    %v84 = vadd.f32 %v56, %v80
    %v85 = vadd.f32 %v57, %v81
    %v86 = vadd.f32 %v58, %v82
    %88 = vset.pattern.permute.xlu0 0
    %89 = vperm.xlu0 %88, %v27
    %v90 = vpop.permute.xlu0 %89
    %93 = vset.pattern.permute.xlu0 0
    %94 = vperm.xlu0 %93, %v28
    %v95 = vpop.permute.xlu0 %94
    %98 = vset.pattern.permute.xlu0 0
    %99 = vperm.xlu0 %98, %v29
    %v100 = vpop.permute.xlu0 %99
    %103 = vset.pattern.permute.xlu0 0
    %104 = vperm.xlu0 %103, %v30
    %v105 = vpop.permute.xlu0 %104
    %v107 = vadd.f32 %v83, %v90
    %v108 = vadd.f32 %v84, %v95
    %v109 = vadd.f32 %v85, %v100
    %v110 = vadd.f32 %v86, %v105
    %v111 = vtanh.pop %v107
    %v112 = vtanh.pop %v108
    %v113 = vtanh.pop %v109
    %v114 = vtanh.pop %v110
    %v115 = vld [vmem:[%s2] sm:$0xff]
    %v116 = vld [vmem:[%s2 + $0x8] sm:$0xff]
    %v117 = vld [vmem:[%s2 + $0x10] sm:$0xff]
    %v118 = vld [vmem:[%s2 + $0x18] sm:$0xff]
    %119 = vset.pattern.permute.xlu0 1
    %120 = vperm.xlu0 %119, %v27
    %v121 = vpop.permute.xlu0 %120
    %123 = vset.pattern.permute.xlu0 1
    %124 = vperm.xlu0 %123, %v28
    %v125 = vpop.permute.xlu0 %124
    %127 = vset.pattern.permute.xlu0 1
    %128 = vperm.xlu0 %127, %v29
    %v129 = vpop.permute.xlu0 %128
    %131 = vset.pattern.permute.xlu0 1
    %132 = vperm.xlu0 %131, %v30
    %v133 = vpop.permute.xlu0 %132
    %vm135 = vcmask 261120
    %v137 = vsel %vm135, %v115, 0
    %v140 = vsel %vm135, %v116, 0
    %v143 = vsel %vm135, %v117, 0
    %v146 = vsel %vm135, %v118, 0
    %148 = vmatprep.subr.mxu0 0.0
    %149 = vmatpush1.msra.mxu0 %v111
    %150 = vmatprep.subr.mxu0 0.0
    %151 = vmatpush1.msra.mxu0 %v112
    %152 = vmatprep.subr.mxu0 0.0
    %153 = vmatpush1.msra.mxu0 %v113
    %154 = vmatprep.subr.mxu0 0.0
    %155 = vmatpush1.msra.mxu0 %v114
    %156 = vmatprep.subr.mxu0 0.0
    %157 = vmatpush1.msra.mxu0 0.0
    %158 = vmatprep.subr.mxu0 0.0
    %159 = vmatpush1.msra.mxu0 0.0
    %160 = vmatprep.subr.mxu0 0.0
    %161 = vmatpush1.msra.mxu0 0.0
    %162 = vmatprep.subr.mxu0 0.0
    %163 = vmatpush1.msra.mxu0 0.0
    %164 = vmatprep.subr.mxu0 0.0
    %165 = vmatpush1.msra.mxu0 0.0
    %166 = vmatprep.subr.mxu0 0.0
    %167 = vmatpush1.msra.mxu0 0.0
    %168 = vmatprep.subr.mxu0 0.0
    %169 = vmatpush1.msra.mxu0 0.0
    %170 = vmatprep.subr.mxu0 0.0
    %171 = vmatpush1.msra.mxu0 0.0
    %172 = vmatprep.subr.mxu0 0.0
    %173 = vmatpush1.msra.mxu0 0.0
    %174 = vmatprep.subr.mxu0 0.0
    %175 = vmatpush1.msra.mxu0 0.0
    %176 = vmatprep.subr.mxu0 0.0
    %177 = vmatpush1.msra.mxu0 0.0
    %178 = vmatprep.subr.mxu0 0.0
    %179 = vmatpush1.msra.mxu0 0.0
    %180 = vmatprep.subr.mxu0 0.0
    %181 = vmatpush1.msra.mxu0 0.0
    %182 = vmatprep.subr.mxu0 0.0
    %183 = vmatpush1.msra.mxu0 0.0
    %184 = vmatprep.subr.mxu0 0.0
    %185 = vmatpush1.msra.mxu0 0.0
    %186 = vmatprep.subr.mxu0 0.0
    %187 = vmatpush1.msra.mxu0 0.0
    %188 = vmatprep.subr.mxu0 0.0
    %189 = vmatpush1.msra.mxu0 0.0
    %190 = vmatprep.subr.mxu0 0.0
    %191 = vmatpush1.msra.mxu0 0.0
    %192 = vmatprep.subr.mxu0 0.0
    %193 = vmatpush1.msra.mxu0 0.0
    %194 = vmatprep.subr.mxu0 0.0
    %195 = vmatpush1.msra.mxu0 0.0
    %196 = vmatprep.subr.mxu0 0.0
    %197 = vmatpush1.msra.mxu0 0.0
    %198 = vmatprep.subr.mxu0 0.0
    %199 = vmatpush1.msra.mxu0 0.0
    %200 = vmatprep.subr.mxu0 0.0
    %201 = vmatpush1.msra.mxu0 0.0
    %202 = vmatprep.subr.mxu0 0.0
    %203 = vmatpush1.msra.mxu0 0.0
    %204 = vmatprep.subr.mxu0 0.0
    %205 = vmatpush1.msra.mxu0 0.0
    %206 = vmatprep.subr.mxu0 0.0
    %207 = vmatpush1.msra.mxu0 0.0
    %208 = vmatprep.subr.mxu0 0.0
    %209 = vmatpush1.msra.mxu0 0.0
    %210 = vmatprep.subr.mxu0 0.0
    %211 = vmatpush1.msra.mxu0 0.0
    %212 = vmatprep.mubr.f32.mxu0 0.0
    %213 = vmatmul.mubr.f32.gmra.mrb[0].mxu0 %v137
    %v214 = vpop.f32.mrb[0].mxu0
    %v215 = vadd.f32 %v121, %v214
    %v216 = vpop.f32.mrb[0].mxu0
    %217 = vmatprep.mubr.f32.mxu0 0.0
    %218 = vmatmul.mubr.f32.gmra.mrb[0].mxu0 %v140
    %v219 = vpop.f32.mrb[0].mxu0
    %v220 = vadd.f32 %v125, %v219
    %v221 = vpop.f32.mrb[0].mxu0
    %222 = vmatprep.mubr.f32.mxu0 0.0
    %223 = vmatmul.mubr.f32.gmra.mrb[0].mxu0 %v143
    %v224 = vpop.f32.mrb[0].mxu0
    %v225 = vadd.f32 %v129, %v224
    %v226 = vpop.f32.mrb[0].mxu0
    %227 = vmatprep.mubr.f32.mxu0 0.0
    %228 = vmatmul.mubr.f32.gmra.mrb[0].mxu0 %v146
    %v229 = vpop.f32.mrb[0].mxu0
    %v230 = vadd.f32 %v133, %v229
    %v231 = vpop.f32.mrb[0].mxu0
    %232 = vdwg.mxu0
    %v233 = vtanh.pop %v215
    %v234 = vtanh.pop %v220
    %v235 = vtanh.pop %v225
    %v236 = vtanh.pop %v230
    %237 = vset.pattern.permute.xlu0 2
    %238 = vperm.xlu0 %237, %v27
    %v239 = vpop.permute.xlu0 %238
    %241 = vset.pattern.permute.xlu0 2
    %242 = vperm.xlu0 %241, %v28
    %v243 = vpop.permute.xlu0 %242
    %245 = vset.pattern.permute.xlu0 2
    %246 = vperm.xlu0 %245, %v29
    %v247 = vpop.permute.xlu0 %246
    %249 = vset.pattern.permute.xlu0 2
    %250 = vperm.xlu0 %249, %v30
    %v251 = vpop.permute.xlu0 %250
    %v253 = vmul.f32 %v233, %v239
    %v254 = vmul.f32 %v234, %v243
    %v255 = vmul.f32 %v235, %v247
    %v256 = vmul.f32 %v236, %v251
    %v257 = vadd.f32 %v253, %v254
    %v258 = vadd.f32 %v257, %v255
    %v259 = vadd.f32 %v258, %v256
    %v260 = vrot.slane %v259, 4
    %v261 = vadd.f32 %v259, %v260
    %v262 = vrot.slane %v261, 2
    %v263 = vadd.f32 %v261, %v262
    %v264 = vrot.slane %v263, 1
    %v265 = vadd.f32 %v263, %v264
    %s266 = sld [smem:[#allocation2]]
    %v267 = vstv %s266
    %v268 = vadd.f32 %v265, %v267
    %v269 = vmul.f32 %v268, 0.5
    %v270 = vtanh.pop %v269
    %v271 = vmul.f32 %v270, 0.5
    %v272 = vadd.f32 %v271, 0.5
    %273 = vst [vmem:[#allocation3] sm:$0x1] %v272
    // Predicated region
    $region22: #{tpu_custom_call.1} parent=1 // pred_check
      _
    $region23: #{tpu_custom_call.1} parent=1 // pred_check_branch
      %275 = sbr.rel (0) target = $region25
    $region24: #{tpu_custom_call.1} parent=1 // pred_region
      %s277 = ssub.s32 16, 16
      %278 = vsyncadd [#allocation4], %s277
      %s280 = sshll.u32 [#allocation3], 4
      %s281 = int_to_ptr.vmem [resolvable:$true] %s280
      %283 = dma.vmem_to_hbm [thread:$0]  %s281, 16, %s5, [#allocation4]
    $region25: #{tpu_custom_call.1} parent=1 // pred_fallthru
      _
    // Predicated region
    $region26: #{tpu_custom_call.1} parent=1 // pred_check
      _
    $region27: #{tpu_custom_call.1} parent=1 // pred_check_branch
      %285 = sbr.rel (0) target = $region29
    $region28: #{tpu_custom_call.1} parent=1 // pred_region
      %286 = dma.done [#allocation4], 16
    $region29: #{tpu_custom_call.1} parent=1 // pred_fallthru
      _
    %287 = vsyncpa [#allocation4], 1

// kernel: tpu_custom_call.1
$region0: #{tpu_custom_call.1}
  #allocation0 [shape = 'u32[]', space=smem, size = 0x4, offset = 0x4, fixed_abs, tag = 'smem constant byte address 0x4 - core index']
  #allocation1 [shape = 'u32[144,128]{1,0:T(1,128)}', space=vmem, size = 0x12000, scoped, tag = 'internal scratch']
  #allocation2 [shape = 'f32[1,1]{1,0:T(1,128)S(6)}', space=smem, size = 0x200, scoped, tag = 'scoped memory for tpu_custom_call.1']
  %s0 = inlined_call_operand.vmem [shape: f32[2,8], index: 0, kind: input, shape index: {}]
  %s1 = inlined_call_operand.vmem [shape: f32[32,2], index: 1, kind: input, shape index: {}]
  %s2 = inlined_call_operand.vmem [shape: f32[32,32], index: 2, kind: input, shape index: {}]
  %s3 = inlined_call_operand.vmem [shape: f32[32,3], index: 3, kind: input, shape index: {}]
  %s4 = inlined_call_operand.<no memory space> [shape: f32[1,1], index: 4, kind: input, shape index: {}]
  %s5 = inlined_call_operand.hbm [shape: f32[1,8], index: 5, kind: output, shape index: {}]
  %s6 = sld [smem:[#allocation0]]
  $region30: #{tpu_custom_call.1} parent=0
    _
  %s8 = ssub.s32 1, %s6
  %s9 = scalar_select 0, %s8, %s6
  %10 = sst [smem:[#allocation2]] %s4
  $region1: #{tpu_custom_call.1} parent=0
    #allocation3 [shape = 'u8[512]{0}', space=vmem, size = 0x400, scoped, tag = 'output window, operand 0, single buffered']
    #allocation4 [shape = 's32[1]{0}', space=sflag, size = 0x4, scoped, tag = 'scoped memory for tpu_custom_call.1']
    %11 = vsyncpa [#allocation4], 0
    // Predicated region
    $region2: #{tpu_custom_call.1} parent=1 // pred_check
      _
    $region3: #{tpu_custom_call.1} parent=1 // pred_check_branch
      %13 = sbr.rel (0) target = $region5
    $region4: #{tpu_custom_call.1} parent=1 // pred_region
      _
    $region5: #{tpu_custom_call.1} parent=1 // pred_fallthru
      _
    // Predicated region
    $region6: #{tpu_custom_call.1} parent=1 // pred_check
      _
    $region7: #{tpu_custom_call.1} parent=1 // pred_check_branch
      %15 = sbr.rel (0) target = $region9
    $region8: #{tpu_custom_call.1} parent=1 // pred_region
      _
    $region9: #{tpu_custom_call.1} parent=1 // pred_fallthru
      _
    // Predicated region
    $region10: #{tpu_custom_call.1} parent=1 // pred_check
      _
    $region11: #{tpu_custom_call.1} parent=1 // pred_check_branch
      %17 = sbr.rel (0) target = $region13
    $region12: #{tpu_custom_call.1} parent=1 // pred_region
      _
    $region13: #{tpu_custom_call.1} parent=1 // pred_fallthru
      _
    // Predicated region
    $region14: #{tpu_custom_call.1} parent=1 // pred_check
      _
    $region15: #{tpu_custom_call.1} parent=1 // pred_check_branch
      %19 = sbr.rel (0) target = $region17
    $region16: #{tpu_custom_call.1} parent=1 // pred_region
      _
    $region17: #{tpu_custom_call.1} parent=1 // pred_fallthru
      _
    // Predicated region
    $region18: #{tpu_custom_call.1} parent=1 // pred_check
      _
    $region19: #{tpu_custom_call.1} parent=1 // pred_check_branch
      %21 = sbr.rel (0) target = $region21
    $region20: #{tpu_custom_call.1} parent=1 // pred_region
      _
    $region21: #{tpu_custom_call.1} parent=1 // pred_fallthru
      _
    %v22 = vld [vmem:[%s0] sm:$0x3]
    %v23 = vld [vmem:[%s1] sm:$0xff]
    %v24 = vld [vmem:[%s1 + $0x8] sm:$0xff]
    %v25 = vld [vmem:[%s1 + $0x10] sm:$0xff]
    %v26 = vld [vmem:[%s1 + $0x18] sm:$0xff]
    %v27 = vld [vmem:[%s3] sm:$0xff]
    %v28 = vld [vmem:[%s3 + $0x8] sm:$0xff]
    %v29 = vld [vmem:[%s3 + $0x10] sm:$0xff]
    %v30 = vld [vmem:[%s3 + $0x18] sm:$0xff]
    %32 = vset.pattern.permute.xlu0 0
    %33 = vperm.xlu0 %32, %v23
    %v34 = vpop.permute.xlu0 %33
    %37 = vset.pattern.permute.xlu0 0
    %38 = vperm.xlu0 %37, %v24
    %v39 = vpop.permute.xlu0 %38
    %42 = vset.pattern.permute.xlu0 0
    %43 = vperm.xlu0 %42, %v25
    %v44 = vpop.permute.xlu0 %43
    %47 = vset.pattern.permute.xlu0 0
    %48 = vperm.xlu0 %47, %v26
    %v49 = vpop.permute.xlu0 %48
    %v51 = vlaneseq
    %v52 = vshrl.u32 %v51, 7
    %v53 = vsub.s32 0, %v52
    %v54 = vrot.slane %v22, %v53
    %v55 = vmul.f32 %v34, %v54
    %v56 = vmul.f32 %v39, %v54
    %v57 = vmul.f32 %v44, %v54
    %v58 = vmul.f32 %v49, %v54
    %59 = vset.pattern.permute.xlu0 1
    %60 = vperm.xlu0 %59, %v23
    %v61 = vpop.permute.xlu0 %60
    %63 = vset.pattern.permute.xlu0 1
    %64 = vperm.xlu0 %63, %v24
    %v65 = vpop.permute.xlu0 %64
    %67 = vset.pattern.permute.xlu0 1
    %68 = vperm.xlu0 %67, %v25
    %v69 = vpop.permute.xlu0 %68
    %71 = vset.pattern.permute.xlu0 1
    %72 = vperm.xlu0 %71, %v26
    %v73 = vpop.permute.xlu0 %72
    %v75 = vlaneseq
    %v76 = vshrl.u32 %v75, 7
    %v77 = vsub.s32 1, %v76
    %v78 = vrot.slane %v22, %v77
    %v79 = vmul.f32 %v61, %v78
    %v80 = vmul.f32 %v65, %v78
    %v81 = vmul.f32 %v69, %v78
    %v82 = vmul.f32 %v73, %v78
    %v83 = vadd.f32 %v55, %v79
    %v84 = vadd.f32 %v56, %v80
    %v85 = vadd.f32 %v57, %v81
    %v86 = vadd.f32 %v58, %v82
    %88 = vset.pattern.permute.xlu0 0
    %89 = vperm.xlu0 %88, %v27
    %v90 = vpop.permute.xlu0 %89
    %93 = vset.pattern.permute.xlu0 0
    %94 = vperm.xlu0 %93, %v28
    %v95 = vpop.permute.xlu0 %94
    %98 = vset.pattern.permute.xlu0 0
    %99 = vperm.xlu0 %98, %v29
    %v100 = vpop.permute.xlu0 %99
    %103 = vset.pattern.permute.xlu0 0
    %104 = vperm.xlu0 %103, %v30
    %v105 = vpop.permute.xlu0 %104
    %v107 = vadd.f32 %v83, %v90
    %v108 = vadd.f32 %v84, %v95
    %v109 = vadd.f32 %v85, %v100
    %v110 = vadd.f32 %v86, %v105
    %v111 = vtanh.pop %v107
    %v112 = vtanh.pop %v108
    %v113 = vtanh.pop %v109
    %v114 = vtanh.pop %v110
    %v115 = vld [vmem:[%s2] sm:$0xff]
    %v116 = vld [vmem:[%s2 + $0x8] sm:$0xff]
    %v117 = vld [vmem:[%s2 + $0x10] sm:$0xff]
    %v118 = vld [vmem:[%s2 + $0x18] sm:$0xff]
    %119 = vset.pattern.permute.xlu0 1
    %120 = vperm.xlu0 %119, %v27
    %v121 = vpop.permute.xlu0 %120
    %123 = vset.pattern.permute.xlu0 1
    %124 = vperm.xlu0 %123, %v28
    %v125 = vpop.permute.xlu0 %124
    %127 = vset.pattern.permute.xlu0 1
    %128 = vperm.xlu0 %127, %v29
    %v129 = vpop.permute.xlu0 %128
    %131 = vset.pattern.permute.xlu0 1
    %132 = vperm.xlu0 %131, %v30
    %v133 = vpop.permute.xlu0 %132
    %vm135 = vcmask 261120
    %v137 = vsel %vm135, %v115, 0
    %v140 = vsel %vm135, %v116, 0
    %v143 = vsel %vm135, %v117, 0
    %v146 = vsel %vm135, %v118, 0
    %148 = vmatprep.subr.mxu0 0.0
    %149 = vmatpush1.msra.mxu0 %v111
    %150 = vmatprep.subr.mxu0 0.0
    %151 = vmatpush1.msra.mxu0 %v112
    %152 = vmatprep.subr.mxu0 0.0
    %153 = vmatpush1.msra.mxu0 %v113
    %154 = vmatprep.subr.mxu0 0.0
    %155 = vmatpush1.msra.mxu0 %v114
    %156 = vmatprep.subr.mxu0 0.0
    %157 = vmatpush1.msra.mxu0 0.0
    %158 = vmatprep.subr.mxu0 0.0
    %159 = vmatpush1.msra.mxu0 0.0
    %160 = vmatprep.subr.mxu0 0.0
    %161 = vmatpush1.msra.mxu0 0.0
    %162 = vmatprep.subr.mxu0 0.0
    %163 = vmatpush1.msra.mxu0 0.0
    %164 = vmatprep.subr.mxu0 0.0
    %165 = vmatpush1.msra.mxu0 0.0
    %166 = vmatprep.subr.mxu0 0.0
    %167 = vmatpush1.msra.mxu0 0.0
    %168 = vmatprep.subr.mxu0 0.0
    %169 = vmatpush1.msra.mxu0 0.0
    %170 = vmatprep.subr.mxu0 0.0
    %171 = vmatpush1.msra.mxu0 0.0
    %172 = vmatprep.subr.mxu0 0.0
    %173 = vmatpush1.msra.mxu0 0.0
    %174 = vmatprep.subr.mxu0 0.0
    %175 = vmatpush1.msra.mxu0 0.0
    %176 = vmatprep.subr.mxu0 0.0
    %177 = vmatpush1.msra.mxu0 0.0
    %178 = vmatprep.subr.mxu0 0.0
    %179 = vmatpush1.msra.mxu0 0.0
    %180 = vmatprep.subr.mxu0 0.0
    %181 = vmatpush1.msra.mxu0 0.0
    %182 = vmatprep.subr.mxu0 0.0
    %183 = vmatpush1.msra.mxu0 0.0
    %184 = vmatprep.subr.mxu0 0.0
    %185 = vmatpush1.msra.mxu0 0.0
    %186 = vmatprep.subr.mxu0 0.0
    %187 = vmatpush1.msra.mxu0 0.0
    %188 = vmatprep.subr.mxu0 0.0
    %189 = vmatpush1.msra.mxu0 0.0
    %190 = vmatprep.subr.mxu0 0.0
    %191 = vmatpush1.msra.mxu0 0.0
    %192 = vmatprep.subr.mxu0 0.0
    %193 = vmatpush1.msra.mxu0 0.0
    %194 = vmatprep.subr.mxu0 0.0
    %195 = vmatpush1.msra.mxu0 0.0
    %196 = vmatprep.subr.mxu0 0.0
    %197 = vmatpush1.msra.mxu0 0.0
    %198 = vmatprep.subr.mxu0 0.0
    %199 = vmatpush1.msra.mxu0 0.0
    %200 = vmatprep.subr.mxu0 0.0
    %201 = vmatpush1.msra.mxu0 0.0
    %202 = vmatprep.subr.mxu0 0.0
    %203 = vmatpush1.msra.mxu0 0.0
    %204 = vmatprep.subr.mxu0 0.0
    %205 = vmatpush1.msra.mxu0 0.0
    %206 = vmatprep.subr.mxu0 0.0
    %207 = vmatpush1.msra.mxu0 0.0
    %208 = vmatprep.subr.mxu0 0.0
    %209 = vmatpush1.msra.mxu0 0.0
    %210 = vmatprep.subr.mxu0 0.0
    %211 = vmatpush1.msra.mxu0 0.0
    %212 = vmatprep.mubr.f32.mxu0 0.0
    %213 = vmatmul.mubr.f32.gmra.mrb[0].mxu0 %v137
    %v214 = vpop.f32.mrb[0].mxu0
    %v215 = vadd.f32 %v121, %v214
    %v216 = vpop.f32.mrb[0].mxu0
    %217 = vmatprep.mubr.f32.mxu0 0.0
    %218 = vmatmul.mubr.f32.gmra.mrb[0].mxu0 %v140
    %v219 = vpop.f32.mrb[0].mxu0
    %v220 = vadd.f32 %v125, %v219
    %v221 = vpop.f32.mrb[0].mxu0
    %222 = vmatprep.mubr.f32.mxu0 0.0
    %223 = vmatmul.mubr.f32.gmra.mrb[0].mxu0 %v143
    %v224 = vpop.f32.mrb[0].mxu0
    %v225 = vadd.f32 %v129, %v224
    %v226 = vpop.f32.mrb[0].mxu0
    %227 = vmatprep.mubr.f32.mxu0 0.0
    %228 = vmatmul.mubr.f32.gmra.mrb[0].mxu0 %v146
    %v229 = vpop.f32.mrb[0].mxu0
    %v230 = vadd.f32 %v133, %v229
    %v231 = vpop.f32.mrb[0].mxu0
    %232 = vdwg.mxu0
    %v233 = vtanh.pop %v215
    %v234 = vtanh.pop %v220
    %v235 = vtanh.pop %v225
    %v236 = vtanh.pop %v230
    %237 = vset.pattern.permute.xlu0 2
    %238 = vperm.xlu0 %237, %v27
    %v239 = vpop.permute.xlu0 %238
    %241 = vset.pattern.permute.xlu0 2
    %242 = vperm.xlu0 %241, %v28
    %v243 = vpop.permute.xlu0 %242
    %245 = vset.pattern.permute.xlu0 2
    %246 = vperm.xlu0 %245, %v29
    %v247 = vpop.permute.xlu0 %246
    %249 = vset.pattern.permute.xlu0 2
    %250 = vperm.xlu0 %249, %v30
    %v251 = vpop.permute.xlu0 %250
    %v253 = vmul.f32 %v233, %v239
    %v254 = vmul.f32 %v234, %v243
    %v255 = vmul.f32 %v235, %v247
    %v256 = vmul.f32 %v236, %v251
    %v257 = vadd.f32 %v253, %v254
    %v258 = vadd.f32 %v257, %v255
    %v259 = vadd.f32 %v258, %v256
    %v260 = vrot.slane %v259, 4
    %v261 = vadd.f32 %v259, %v260
    %v262 = vrot.slane %v261, 2
    %v263 = vadd.f32 %v261, %v262
    %v264 = vrot.slane %v263, 1
    %v265 = vadd.f32 %v263, %v264
    %s266 = sld [smem:[#allocation2]]
    %v267 = vstv %s266
    %v268 = vadd.f32 %v265, %v267
    %v269 = vmul.f32 %v268, 0.5
    %v270 = vtanh.pop %v269
    %v271 = vmul.f32 %v270, 0.5
    %v272 = vadd.f32 %v271, 0.5
    %273 = vst [vmem:[#allocation3] sm:$0x1] %v272
    // Predicated region
    $region22: #{tpu_custom_call.1} parent=1 // pred_check
      _
    $region23: #{tpu_custom_call.1} parent=1 // pred_check_branch
      %275 = sbr.rel (0) target = $region25
    $region24: #{tpu_custom_call.1} parent=1 // pred_region
      %s277 = ssub.s32 16, 16
      %278 = vsyncadd [#allocation4], %s277
      %s280 = sshll.u32 [#allocation3], 4
      %s281 = int_to_ptr.vmem [resolvable:$true] %s280
      %283 = dma.vmem_to_hbm [thread:$0]  %s281, 16, %s5, [#allocation4]
    $region25: #{tpu_custom_call.1} parent=1 // pred_fallthru
      _
    // Predicated region
    $region26: #{tpu_custom_call.1} parent=1 // pred_check
      _
    $region27: #{tpu_custom_call.1} parent=1 // pred_check_branch
      %285 = sbr.rel (0) target = $region29
    $region28: #{tpu_custom_call.1} parent=1 // pred_region
      %286 = dma.done [#allocation4], 16
    $region29: #{tpu_custom_call.1} parent=1 // pred_fallthru
      _
    %287 = vsyncpa [#allocation4], 1

</llo_original>
